<compile_context>
chip_gen: v7x
topology: tpu7x:2x2x1
jax: 0.10.0
libtpu: 0.0.40
codegen_flags: <defaults>
</compile_context>

<pallas_src>
import functools

import jax
import jax.numpy as jnp
from jax.experimental import pallas as pl
from jax.experimental.pallas import tpu as pltpu


_LANES = 128          # lane width; batch tiles are multiples of this
_MAX_TB = 16384       # max batch rows per grid step (~1 MB f32 activations)


def _round_up(x, m):
    return ((x + m - 1) // m) * m


def _cdiv(a, b):
    return (a + b - 1) // b


def _reward_kernel(x_ref, w1_ref, b1_ref, w2_ref, b2_ref, o_ref):
    """One batch tile, feature-major (batch on lanes).

    x_ref : [D_in, TB]  activations (obs||acts transposed), batch on lanes
    w1_ref: [H, D_in]   first Linear weight (PyTorch [out, in] layout)
    b1_ref: [H, 1]      first bias as a column
    w2_ref: [H, 1]      second Linear weight as a column
    b2_ref: SMEM (1,)   second bias scalar
    o_ref : [1, TB]     lane-dense reward row
    """
    # Layer 1 on the MXU, f32 accumulation.  Batch stays on lanes, so h and
    # everything downstream is lane-dense.
    h = jnp.dot(w1_ref[...], x_ref[...],
                preferred_element_type=jnp.float32)        # [H, TB] f32
    h = jnp.maximum(h + b1_ref[...], 0.0)                  # bias + ReLU (VPU)
    # Layer 2 (H -> 1): VPU multiply + cross-sublane reduce -> [1, TB].
    y = jnp.sum(h * w2_ref[...], axis=0, keepdims=True)
    o_ref[...] = (y + b2_ref[0]).astype(o_ref.dtype)


@functools.partial(jax.jit, static_argnames=("compute_dtype",))
def reward_net_forward(obs, acts, params, compute_dtype=jnp.float32):
    """Pallas-backed RewardNet.forward. Returns reward of shape [B]."""
    obs = jnp.asarray(obs, jnp.float32)     # no-op for f32 callers
    acts = jnp.asarray(acts, jnp.float32)
    B, obs_size = obs.shape
    _, act_size = acts.shape
    d_in = obs_size + act_size
    hidden = params["w1"].shape[0]

    # ---- batch tiling ----------------------------------------------------
    b_lanes = _round_up(max(B, 1), _LANES)
    if b_lanes <= 2 * _LANES:
        num_tiles = 1                                   # tiny batch: one step
    else:
        # >= 2 steps so ("parallel",) can shard across v7x's two TensorCores;
        # cap the tile so per-step VMEM stays ~10 MB on every generation.
        num_tiles = max(2, _cdiv(b_lanes, _MAX_TB))
    tb = _round_up(_cdiv(b_lanes, num_tiles), _LANES)
    b_pad = num_tiles * tb
    grid = (num_tiles,)

    # ---- activations: ONE fused layout copy -------------------------------
    # concat + (small) pad + transpose + optional cast fuse into a single XLA
    # copy; the kernel sees a feature-major [D_in, B_pad] slab (batch on lanes).
    x = jnp.concatenate([obs, acts], axis=1)            # [B, D_in]
    if b_pad != B:
        x = jnp.pad(x, ((0, b_pad - B), (0, 0)))        # rides the same copy
    x_t = x.T.astype(compute_dtype)                     # [D_in, B_pad]

    # ---- parameters (tiny; reshaped from PyTorch layouts) -----------------
    w1 = params["w1"].astype(compute_dtype)                     # [H, D_in]
    b1 = params["b1"].reshape(hidden, 1).astype(jnp.float32)    # [H, 1]
    w2 = params["w2"].reshape(hidden, 1).astype(jnp.float32)    # [H, 1]
    b2 = params["b2"].reshape(1).astype(jnp.float32)            # (1,) SMEM

    x_bytes = jnp.dtype(compute_dtype).itemsize
    cost = pl.CostEstimate(
        flops=2 * b_pad * hidden * (d_in + 1),
        transcendentals=0,
        bytes_accessed=(b_pad * d_in * x_bytes          # activations in
                        + b_pad * 4                     # reward out
                        + hidden * d_in * x_bytes       # W1
                        + (2 * hidden + 1) * 4),        # b1, w2, b2
    )

    out = pl.pallas_call(
        _reward_kernel,
        out_shape=jax.ShapeDtypeStruct((1, b_pad), jnp.float32),
        grid=grid,
        in_specs=[
            pl.BlockSpec((d_in, tb), lambda i: (0, i)),          # activations
            pl.BlockSpec((hidden, d_in), lambda i: (0, 0)),      # W1 (resident)
            pl.BlockSpec((hidden, 1), lambda i: (0, 0)),         # b1
            pl.BlockSpec((hidden, 1), lambda i: (0, 0)),         # w2 column
            pl.BlockSpec(memory_space=pltpu.MemorySpace.SMEM),   # b2 scalar
        ],
        out_specs=pl.BlockSpec((1, tb), lambda i: (0, i)),       # lane-dense
        compiler_params=pltpu.CompilerParams(
            dimension_semantics=("parallel",),
            vmem_limit_bytes=32 * 1024 * 1024,
        ),
        cost_estimate=cost,
    )(x_t, w1, b1, w2, b2)

    return out[0, :B]                                    # squeeze(dim=1)


def init_params(key, obs_size, act_size, hidden=64):
    """nn.Linear-style init, stored in PyTorch layouts:
       w1: [hidden, obs+act], b1: [hidden], w2: [1, hidden], b2: [1]."""
    d_in = obs_size + act_size
    k1, k2, k3, k4 = jax.random.split(key, 4)
    lim1 = 1.0 / jnp.sqrt(d_in)
    lim2 = 1.0 / jnp.sqrt(hidden)
    return {
        "w1": jax.random.uniform(k1, (hidden, d_in), jnp.float32, -lim1, lim1),
        "b1": jax.random.uniform(k2, (hidden,), jnp.float32, -lim1, lim1),
        "w2": jax.random.uniform(k3, (1, hidden), jnp.float32, -lim2, lim2),
        "b2": jax.random.uniform(k4, (1,), jnp.float32, -lim2, lim2),
    }


def reward_net_reference(obs, acts, params, compute_dtype=jnp.float32):
    """Pure-JAX reference mirroring the PyTorch module."""
    x = jnp.concatenate([obs, acts], axis=1).astype(compute_dtype)
    w1 = params["w1"].astype(compute_dtype)                     # [H, D_in]
    h = jnp.dot(x, w1.T, preferred_element_type=jnp.float32)
    h = jnp.maximum(h + params["b1"].astype(jnp.float32), 0.0)
    y = h @ params["w2"].T.astype(jnp.float32) + params["b2"].astype(jnp.float32)
    return y[:, 0]


# TODO(synk): CrowdAvoidanceEnv / pybullet GUI setup and predict_processed's
# torch->numpy plumbing are outside the forward math and are not reproduced.

if __name__ == "__main__":
    key = jax.random.PRNGKey(0)
    kp, ko, ka, ko2, ka2 = jax.random.split(key, 5)

    obs_size, act_size, hidden = 12, 4, 64
    params = init_params(kp, obs_size, act_size, hidden=hidden)

    # Small batch (single grid step), f32: exact-path check.
    obs = jax.random.normal(ko, (8, obs_size), jnp.float32)
    acts = jax.random.normal(ka, (8, act_size), jnp.float32)
    rew = reward_net_forward(obs, acts, params)
    jax.block_until_ready(rew)
    ref = reward_net_reference(obs, acts, params)
    assert rew.shape == (8,)
    assert jnp.allclose(rew, ref, atol=1e-4, rtol=1e-4)

    # Ragged batch that does not divide the tile: exercises the 2-step
    # parallel grid and the fused padding path.
    obs2 = jax.random.normal(ko2, (300, obs_size), jnp.float32)
    acts2 = jax.random.normal(ka2, (300, act_size), jnp.float32)
    rew2 = reward_net_forward(obs2, acts2, params)
    jax.block_until_ready(rew2)
    ref2 = reward_net_reference(obs2, acts2, params)
    assert rew2.shape == (300,)
    assert jnp.allclose(rew2, ref2, atol=1e-4, rtol=1e-4)

    # Optional bf16-input path (cast fused into the layout copy, f32 accumulate).
    rew_bf16 = reward_net_forward(obs2, acts2, params, compute_dtype=jnp.bfloat16)
    jax.block_until_ready(rew_bf16)
    ref_bf16 = reward_net_reference(obs2, acts2, params, compute_dtype=jnp.bfloat16)
    assert jnp.allclose(rew_bf16, ref_bf16, atol=2e-3, rtol=2e-3)

    print("KERNEL_OK")
</pallas_src>

<mosaic_0001>
module attributes {stable_mosaic.version = 11 : i64} {
  func.func @_reward_kernel(%arg0: i32, %arg1: memref<16x128xf32, #tpu.memory_space<vmem>>, %arg2: memref<64x16xf32, #tpu.memory_space<vmem>>, %arg3: memref<64x1xf32, #tpu.memory_space<vmem>>, %arg4: memref<64x1xf32, #tpu.memory_space<vmem>>, %arg5: memref<1xf32, #tpu.memory_space<smem>>, %arg6: memref<1x128xf32, #tpu.memory_space<vmem>>) attributes {dimension_semantics = [#tpu.dimension_semantics<parallel>], iteration_bounds = array<i64: 1>, scalar_prefetch = 0 : i64, scratch_operands = 0 : i64, tpu.core_type = #tpu.core_type<tc>, window_params = [{transform_indices = @transform_0, window_bounds = array<i64: 16, 128>}, {pipeline_mode = #tpu.pipeline_mode<synchronous>, transform_indices = @transform_1, window_bounds = array<i64: 64, 16>}, {pipeline_mode = #tpu.pipeline_mode<synchronous>, transform_indices = @transform_2, window_bounds = array<i64: 64, 1>}, {pipeline_mode = #tpu.pipeline_mode<synchronous>, transform_indices = @transform_3, window_bounds = array<i64: 64, 1>}, {transform_indices = @transform_4, window_bounds = array<i64: 1>}, {transform_indices = @transform_5, window_bounds = array<i64: 1, 128>}]} {
    %c0 = arith.constant 0 : index
    %c0_0 = arith.constant 0 : index
    %0 = vector.load %arg2[%c0, %c0_0] : memref<64x16xf32, #tpu.memory_space<vmem>>, vector<64x16xf32>
    %c0_1 = arith.constant 0 : index
    %c0_2 = arith.constant 0 : index
    %1 = vector.load %arg1[%c0_1, %c0_2] : memref<16x128xf32, #tpu.memory_space<vmem>>, vector<16x128xf32>
    %cst = arith.constant dense<0.000000e+00> : vector<64x128xf32>
    %2 = tpu.matmul %0, %1, %cst {dimension_numbers = #tpu.dot_dimension_numbers<[1], [0], [0], [1], [0, 0, 1, 1], [], []>} : vector<64x16xf32>, vector<16x128xf32>, vector<64x128xf32> -> vector<64x128xf32>
    %c0_3 = arith.constant 0 : index
    %c0_4 = arith.constant 0 : index
    %3 = vector.load %arg3[%c0_3, %c0_4] : memref<64x1xf32, #tpu.memory_space<vmem>>, vector<64x1xf32>
    %4 = vector.broadcast %3 : vector<64x1xf32> to vector<64x128xf32>
    %5 = arith.addf %2, %4 : vector<64x128xf32>
    %cst_5 = arith.constant 0.000000e+00 : f32
    %6 = vector.broadcast %cst_5 : f32 to vector<64x128xf32>
    %7 = arith.maximumf %5, %6 : vector<64x128xf32>
    %c0_6 = arith.constant 0 : index
    %c0_7 = arith.constant 0 : index
    %8 = vector.load %arg4[%c0_6, %c0_7] : memref<64x1xf32, #tpu.memory_space<vmem>>, vector<64x1xf32>
    %9 = vector.broadcast %8 : vector<64x1xf32> to vector<64x128xf32>
    %10 = arith.mulf %7, %9 : vector<64x128xf32>
    %cst_8 = arith.constant dense<0.000000e+00> : vector<128xf32>
    %11 = vector.multi_reduction <add>, %10, %cst_8 [0] : vector<64x128xf32> to vector<128xf32>
    %12 = vector.shape_cast %11 : vector<128xf32> to vector<1x128xf32>
    %c0_9 = arith.constant 0 : index
    %13 = memref.load %arg5[%c0_9] : memref<1xf32, #tpu.memory_space<smem>>
    %14 = vector.broadcast %13 : f32 to vector<1x128xf32>
    %15 = arith.addf %12, %14 : vector<1x128xf32>
    %c0_10 = arith.constant 0 : index
    %c0_11 = arith.constant 0 : index
    %16 = vector.load %arg6[%c0_10, %c0_11] : memref<1x128xf32, #tpu.memory_space<vmem>>, vector<1x128xf32>
    tpu.vector_store %arg6[%c0_10, %c0_11], %15 {strides = array<i32>} : memref<1x128xf32, #tpu.memory_space<vmem>>, vector<1x128xf32>,
    return
  }
  func.func @transform_0(%arg0: i32) -> (i32, i32) {
    %c0_i32 = arith.constant 0 : i32
    %c0_i32_0 = arith.constant 0 : i32
    return %c0_i32, %arg0 : i32, i32
  }
  func.func @transform_1(%arg0: i32) -> (i32, i32) {
    %c0_i32 = arith.constant 0 : i32
    %c0_i32_0 = arith.constant 0 : i32
    %c0_i32_1 = arith.constant 0 : i32
    return %c0_i32, %c0_i32_0 : i32, i32
  }
  func.func @transform_2(%arg0: i32) -> (i32, i32) {
    %c0_i32 = arith.constant 0 : i32
    %c0_i32_0 = arith.constant 0 : i32
    %c0_i32_1 = arith.constant 0 : i32
    return %c0_i32, %c0_i32_0 : i32, i32
  }
  func.func @transform_3(%arg0: i32) -> (i32, i32) {
    %c0_i32 = arith.constant 0 : i32
    %c0_i32_0 = arith.constant 0 : i32
    %c0_i32_1 = arith.constant 0 : i32
    return %c0_i32, %c0_i32_0 : i32, i32
  }
  func.func @transform_4(%arg0: i32) -> i32 {
    %c0_i32 = arith.constant 0 : i32
    %c0_i32_0 = arith.constant 0 : i32
    return %c0_i32 : i32
  }
  func.func @transform_5(%arg0: i32) -> (i32, i32) {
    %c0_i32 = arith.constant 0 : i32
    %c0_i32_0 = arith.constant 0 : i32
    return %c0_i32, %arg0 : i32, i32
  }
}

</mosaic_0001>

<llo_original>
// kernel: reward_net_forward.1
$region0: #{reward_net_forward.1}
  #allocation0 [shape = 'u32[]', space=smem, size = 0x4, offset = 0x4, fixed_abs, tag = 'smem constant byte address 0x4 - core index']
  #allocation1 [shape = 'u32[144,128]{1,0:T(1,128)}', space=vmem, size = 0x12000, scoped, tag = 'internal scratch']
  #allocation2 [shape = 'f32[1]{0:T(128)S(6)}', space=smem, size = 0x200, scoped, tag = 'scoped memory for reward_net_forward.1']
  %s0 = inlined_call_operand.vmem [shape: f32[16,128], index: 0, kind: input, shape index: {}]
  %s1 = inlined_call_operand.vmem [shape: f32[64,16], index: 1, kind: input, shape index: {}]
  %s2 = inlined_call_operand.vmem [shape: f32[64,1], index: 2, kind: input, shape index: {}]
  %s3 = inlined_call_operand.vmem [shape: f32[64,1], index: 3, kind: input, shape index: {}]
  %s4 = inlined_call_operand.<no memory space> [shape: f32[1], index: 4, kind: input, shape index: {}]
  %s5 = inlined_call_operand.vmem [shape: f32[1,128], index: 5, kind: output, shape index: {}]
  %s6 = sld [smem:[#allocation0]]
  $region30: #{reward_net_forward.1} parent=0
    _
  %s8 = ssub.s32 1, %s6
  %s9 = scalar_select 0, %s8, %s6
  %10 = sst [smem:[#allocation2]] %s4
  // Predicated region
  $region2: #{reward_net_forward.1} parent=0 // pred_check
    _
  $region3: #{reward_net_forward.1} parent=0 // pred_check_branch
    %12 = sbr.rel (0) target = $region5
  $region4: #{reward_net_forward.1} parent=0 // pred_region
    _
  $region5: #{reward_net_forward.1} parent=0 // pred_fallthru
    _
  // Predicated region
  $region6: #{reward_net_forward.1} parent=0 // pred_check
    _
  $region7: #{reward_net_forward.1} parent=0 // pred_check_branch
    %14 = sbr.rel (0) target = $region9
  $region8: #{reward_net_forward.1} parent=0 // pred_region
    _
  $region9: #{reward_net_forward.1} parent=0 // pred_fallthru
    _
  // Predicated region
  $region10: #{reward_net_forward.1} parent=0 // pred_check
    _
  $region11: #{reward_net_forward.1} parent=0 // pred_check_branch
    %16 = sbr.rel (0) target = $region13
  $region12: #{reward_net_forward.1} parent=0 // pred_region
    _
  $region13: #{reward_net_forward.1} parent=0 // pred_fallthru
    _
  // Predicated region
  $region14: #{reward_net_forward.1} parent=0 // pred_check
    _
  $region15: #{reward_net_forward.1} parent=0 // pred_check_branch
    %18 = sbr.rel (0) target = $region17
  $region16: #{reward_net_forward.1} parent=0 // pred_region
    _
  $region17: #{reward_net_forward.1} parent=0 // pred_fallthru
    _
  // Predicated region
  $region18: #{reward_net_forward.1} parent=0 // pred_check
    _
  $region19: #{reward_net_forward.1} parent=0 // pred_check_branch
    %20 = sbr.rel (0) target = $region21
  $region20: #{reward_net_forward.1} parent=0 // pred_region
    _
  $region21: #{reward_net_forward.1} parent=0 // pred_fallthru
    _
  %v21 = vld [vmem:[%s1] sm:$0xff]
  %v22 = vld [vmem:[%s1 + $0x8] sm:$0xff]
  %v23 = vld [vmem:[%s1 + $0x10] sm:$0xff]
  %v24 = vld [vmem:[%s1 + $0x18] sm:$0xff]
  %v25 = vld [vmem:[%s1 + $0x20] sm:$0xff]
  %v26 = vld [vmem:[%s1 + $0x28] sm:$0xff]
  %v27 = vld [vmem:[%s1 + $0x30] sm:$0xff]
  %v28 = vld [vmem:[%s1 + $0x38] sm:$0xff]
  %v29 = vld [vmem:[%s0] sm:$0xff]
  %v30 = vld [vmem:[%s0 + $0x8] sm:$0xff]
  %v31 = vld [vmem:[%s2] sm:$0xff]
  %v32 = vld [vmem:[%s2 + $0x8] sm:$0xff]
  %v33 = vld [vmem:[%s2 + $0x10] sm:$0xff]
  %v34 = vld [vmem:[%s2 + $0x18] sm:$0xff]
  %v35 = vld [vmem:[%s2 + $0x20] sm:$0xff]
  %v36 = vld [vmem:[%s2 + $0x28] sm:$0xff]
  %v37 = vld [vmem:[%s2 + $0x30] sm:$0xff]
  %v38 = vld [vmem:[%s2 + $0x38] sm:$0xff]
  %40 = vset.pattern.permute.xlu0 0
  %41 = vperm.xlu0 %40, %v31
  %v42 = vpop.permute.xlu0 %41
  %45 = vset.pattern.permute.xlu0 0
  %46 = vperm.xlu0 %45, %v32
  %v47 = vpop.permute.xlu0 %46
  %50 = vset.pattern.permute.xlu0 0
  %51 = vperm.xlu0 %50, %v33
  %v52 = vpop.permute.xlu0 %51
  %55 = vset.pattern.permute.xlu0 0
  %56 = vperm.xlu0 %55, %v34
  %v57 = vpop.permute.xlu0 %56
  %60 = vset.pattern.permute.xlu0 0
  %61 = vperm.xlu0 %60, %v35
  %v62 = vpop.permute.xlu0 %61
  %65 = vset.pattern.permute.xlu0 0
  %66 = vperm.xlu0 %65, %v36
  %v67 = vpop.permute.xlu0 %66
  %70 = vset.pattern.permute.xlu0 0
  %71 = vperm.xlu0 %70, %v37
  %v72 = vpop.permute.xlu0 %71
  %75 = vset.pattern.permute.xlu0 0
  %76 = vperm.xlu0 %75, %v38
  %v77 = vpop.permute.xlu0 %76
  %vm79 = vcmask 130048
  %v81 = vsel %vm79, %v21, 0
  %v84 = vsel %vm79, %v22, 0
  %v87 = vsel %vm79, %v23, 0
  %v90 = vsel %vm79, %v24, 0
  %v93 = vsel %vm79, %v25, 0
  %v96 = vsel %vm79, %v26, 0
  %v99 = vsel %vm79, %v27, 0
  %v102 = vsel %vm79, %v28, 0
  %104 = vmatprep.subr.mxu0 0.0
  %105 = vmatpush1.msra.mxu0 %v29
  %106 = vmatprep.subr.mxu0 0.0
  %107 = vmatpush1.msra.mxu0 %v30
  %108 = vmatprep.subr.mxu0 0.0
  %109 = vmatpush1.msra.mxu0 0.0
  %110 = vmatprep.subr.mxu0 0.0
  %111 = vmatpush1.msra.mxu0 0.0
  %112 = vmatprep.subr.mxu0 0.0
  %113 = vmatpush1.msra.mxu0 0.0
  %114 = vmatprep.subr.mxu0 0.0
  %115 = vmatpush1.msra.mxu0 0.0
  %116 = vmatprep.subr.mxu0 0.0
  %117 = vmatpush1.msra.mxu0 0.0
  %118 = vmatprep.subr.mxu0 0.0
  %119 = vmatpush1.msra.mxu0 0.0
  %120 = vmatprep.subr.mxu0 0.0
  %121 = vmatpush1.msra.mxu0 0.0
  %122 = vmatprep.subr.mxu0 0.0
  %123 = vmatpush1.msra.mxu0 0.0
  %124 = vmatprep.subr.mxu0 0.0
  %125 = vmatpush1.msra.mxu0 0.0
  %126 = vmatprep.subr.mxu0 0.0
  %127 = vmatpush1.msra.mxu0 0.0
  %128 = vmatprep.subr.mxu0 0.0
  %129 = vmatpush1.msra.mxu0 0.0
  %130 = vmatprep.subr.mxu0 0.0
  %131 = vmatpush1.msra.mxu0 0.0
  %132 = vmatprep.subr.mxu0 0.0
  %133 = vmatpush1.msra.mxu0 0.0
  %134 = vmatprep.subr.mxu0 0.0
  %135 = vmatpush1.msra.mxu0 0.0
  %136 = vmatprep.subr.mxu0 0.0
  %137 = vmatpush1.msra.mxu0 0.0
  %138 = vmatprep.subr.mxu0 0.0
  %139 = vmatpush1.msra.mxu0 0.0
  %140 = vmatprep.subr.mxu0 0.0
  %141 = vmatpush1.msra.mxu0 0.0
  %142 = vmatprep.subr.mxu0 0.0
  %143 = vmatpush1.msra.mxu0 0.0
  %144 = vmatprep.subr.mxu0 0.0
  %145 = vmatpush1.msra.mxu0 0.0
  %146 = vmatprep.subr.mxu0 0.0
  %147 = vmatpush1.msra.mxu0 0.0
  %148 = vmatprep.subr.mxu0 0.0
  %149 = vmatpush1.msra.mxu0 0.0
  %150 = vmatprep.subr.mxu0 0.0
  %151 = vmatpush1.msra.mxu0 0.0
  %152 = vmatprep.subr.mxu0 0.0
  %153 = vmatpush1.msra.mxu0 0.0
  %154 = vmatprep.subr.mxu0 0.0
  %155 = vmatpush1.msra.mxu0 0.0
  %156 = vmatprep.subr.mxu0 0.0
  %157 = vmatpush1.msra.mxu0 0.0
  %158 = vmatprep.subr.mxu0 0.0
  %159 = vmatpush1.msra.mxu0 0.0
  %160 = vmatprep.subr.mxu0 0.0
  %161 = vmatpush1.msra.mxu0 0.0
  %162 = vmatprep.subr.mxu0 0.0
  %163 = vmatpush1.msra.mxu0 0.0
  %164 = vmatprep.subr.mxu0 0.0
  %165 = vmatpush1.msra.mxu0 0.0
  %166 = vmatprep.subr.mxu0 0.0
  %167 = vmatpush1.msra.mxu0 0.0
  %168 = vmatprep.mubr.f32.mxu0 0.0
  %169 = vmatmul.mubr.f32.gmra.mrb[0].mxu0 %v81
  %v170 = vpop.f32.mrb[0].mxu0
  %v171 = vadd.f32 %v42, %v170
  %v172 = vpop.f32.mrb[0].mxu0
  %173 = vmatprep.mubr.f32.mxu0 0.0
  %174 = vmatmul.mubr.f32.gmra.mrb[0].mxu0 %v84
  %v175 = vpop.f32.mrb[0].mxu0
  %v176 = vadd.f32 %v47, %v175
  %v177 = vpop.f32.mrb[0].mxu0
  %178 = vmatprep.mubr.f32.mxu0 0.0
  %179 = vmatmul.mubr.f32.gmra.mrb[0].mxu0 %v87
  %v180 = vpop.f32.mrb[0].mxu0
  %v181 = vadd.f32 %v52, %v180
  %v182 = vpop.f32.mrb[0].mxu0
  %183 = vmatprep.mubr.f32.mxu0 0.0
  %184 = vmatmul.mubr.f32.gmra.mrb[0].mxu0 %v90
  %v185 = vpop.f32.mrb[0].mxu0
  %v186 = vadd.f32 %v57, %v185
  %v187 = vpop.f32.mrb[0].mxu0
  %188 = vmatprep.mubr.f32.mxu0 0.0
  %189 = vmatmul.mubr.f32.gmra.mrb[0].mxu0 %v93
  %v190 = vpop.f32.mrb[0].mxu0
  %v191 = vadd.f32 %v62, %v190
  %v192 = vpop.f32.mrb[0].mxu0
  %193 = vmatprep.mubr.f32.mxu0 0.0
  %194 = vmatmul.mubr.f32.gmra.mrb[0].mxu0 %v96
  %v195 = vpop.f32.mrb[0].mxu0
  %v196 = vadd.f32 %v67, %v195
  %v197 = vpop.f32.mrb[0].mxu0
  %198 = vmatprep.mubr.f32.mxu0 0.0
  %199 = vmatmul.mubr.f32.gmra.mrb[0].mxu0 %v99
  %v200 = vpop.f32.mrb[0].mxu0
  %v201 = vadd.f32 %v72, %v200
  %v202 = vpop.f32.mrb[0].mxu0
  %203 = vmatprep.mubr.f32.mxu0 0.0
  %204 = vmatmul.mubr.f32.gmra.mrb[0].mxu0 %v102
  %v205 = vpop.f32.mrb[0].mxu0
  %v206 = vadd.f32 %v77, %v205
  %v207 = vpop.f32.mrb[0].mxu0
  %208 = vdwg.mxu0
  %v209 = vmax.f32 %v171, 0.0
  %v210 = vmax.f32 %v176, 0.0
  %v211 = vmax.f32 %v181, 0.0
  %v212 = vmax.f32 %v186, 0.0
  %v213 = vmax.f32 %v191, 0.0
  %v214 = vmax.f32 %v196, 0.0
  %v215 = vmax.f32 %v201, 0.0
  %v216 = vmax.f32 %v206, 0.0
  %v217 = vld [vmem:[%s3] sm:$0xff]
  %v218 = vld [vmem:[%s3 + $0x8] sm:$0xff]
  %v219 = vld [vmem:[%s3 + $0x10] sm:$0xff]
  %v220 = vld [vmem:[%s3 + $0x18] sm:$0xff]
  %v221 = vld [vmem:[%s3 + $0x20] sm:$0xff]
  %v222 = vld [vmem:[%s3 + $0x28] sm:$0xff]
  %v223 = vld [vmem:[%s3 + $0x30] sm:$0xff]
  %v224 = vld [vmem:[%s3 + $0x38] sm:$0xff]
  %226 = vset.pattern.permute.xlu0 0
  %227 = vperm.xlu0 %226, %v217
  %v228 = vpop.permute.xlu0 %227
  %231 = vset.pattern.permute.xlu0 0
  %232 = vperm.xlu0 %231, %v218
  %v233 = vpop.permute.xlu0 %232
  %236 = vset.pattern.permute.xlu0 0
  %237 = vperm.xlu0 %236, %v219
  %v238 = vpop.permute.xlu0 %237
  %241 = vset.pattern.permute.xlu0 0
  %242 = vperm.xlu0 %241, %v220
  %v243 = vpop.permute.xlu0 %242
  %246 = vset.pattern.permute.xlu0 0
  %247 = vperm.xlu0 %246, %v221
  %v248 = vpop.permute.xlu0 %247
  %251 = vset.pattern.permute.xlu0 0
  %252 = vperm.xlu0 %251, %v222
  %v253 = vpop.permute.xlu0 %252
  %256 = vset.pattern.permute.xlu0 0
  %257 = vperm.xlu0 %256, %v223
  %v258 = vpop.permute.xlu0 %257
  %261 = vset.pattern.permute.xlu0 0
  %262 = vperm.xlu0 %261, %v224
  %v263 = vpop.permute.xlu0 %262
  %v265 = vmul.f32 %v209, %v228
  %v266 = vmul.f32 %v210, %v233
  %v267 = vmul.f32 %v211, %v238
  %v268 = vmul.f32 %v212, %v243
  %v269 = vmul.f32 %v213, %v248
  %v270 = vmul.f32 %v214, %v253
  %v271 = vmul.f32 %v215, %v258
  %v272 = vmul.f32 %v216, %v263
  %v273 = vadd.f32 %v265, %v266
  %v274 = vadd.f32 %v273, %v267
  %v275 = vadd.f32 %v274, %v268
  %v276 = vadd.f32 %v275, %v269
  %v277 = vadd.f32 %v276, %v270
  %v278 = vadd.f32 %v277, %v271
  %v279 = vadd.f32 %v278, %v272
  %v280 = vrot.slane %v279, 4
  %v281 = vadd.f32 %v279, %v280
  %v282 = vrot.slane %v281, 2
  %v283 = vadd.f32 %v281, %v282
  %v284 = vrot.slane %v283, 1
  %v285 = vadd.f32 %v283, %v284
  %s286 = sld [smem:[#allocation2]]
  %v287 = vstv %s286
  %v288 = vadd.f32 %v285, %v287
  %289 = vst [vmem:[%s5] sm:$0x1] %v288
  // Predicated region
  $region22: #{reward_net_forward.1} parent=0 // pred_check
    _
  $region23: #{reward_net_forward.1} parent=0 // pred_check_branch
    %291 = sbr.rel (0) target = $region25
  $region24: #{reward_net_forward.1} parent=0 // pred_region
    _
  $region25: #{reward_net_forward.1} parent=0 // pred_fallthru
    _
  // Predicated region
  $region26: #{reward_net_forward.1} parent=0 // pred_check
    _
  $region27: #{reward_net_forward.1} parent=0 // pred_check_branch
    %293 = sbr.rel (0) target = $region29
  $region28: #{reward_net_forward.1} parent=0 // pred_region
    _
  $region29: #{reward_net_forward.1} parent=0 // pred_fallthru
    _

</llo_original>
